<compile_context>
chip_gen: v7x
topology: tpu7x:2x2x1
jax: 0.10.0
libtpu: 0.0.40
codegen_flags: <defaults>
</compile_context>

<pallas_src>
import jax
import jax.numpy as jnp
from jax.experimental import pallas as pl
from jax.experimental.pallas import tpu as pltpu

NUM_CLASSES = 10   # len(ContentType)
OUT_WIDTH = 128    # lane-dense output slab width


def _round_up(n, m):
    return ((n + m - 1) // m) * m


def _gelu_exact(x):
    # nn.GELU() default: 0.5 * x * (1 + erf(x / sqrt(2)))
    return 0.5 * x * (1.0 + jax.lax.erf(x * jnp.float32(0.7071067811865476)))


def _make_kernel(tb, d2, d4, c_off, inv_s):
    def kernel(x_ref,
               wf_ref, bf_ref, w2_ref, b2_ref, w3_ref, b3_ref,
               wc2_ref, bc2_ref,
               out_ref, acc_ref):
        s = pl.program_id(1)

        @pl.when(s == 0)
        def _():
            acc_ref[...] = jnp.zeros_like(acc_ref)

        # Streamed partial sum over the sequence axis.  dtype=f32 gives exact
        # accumulation for bf16 tiles without materializing an explicit f32
        # copy of the tile first (the widen fuses into the reduction).
        acc_ref[...] += jnp.sum(x_ref[...], axis=1, dtype=jnp.float32)

        @pl.when(s == pl.num_programs(1) - 1)
        def _():
            seq_repr = acc_ref[...] * jnp.float32(inv_s)   # mean over S

            # Fused first layer of both heads: one MXU pass over seq_repr.
            h_all = jnp.dot(seq_repr, wf_ref[...].astype(jnp.float32),
                            preferred_element_type=jnp.float32)
            h_all = _gelu_exact(h_all + bf_ref[...].astype(jnp.float32))

            # ---- classifier head ----  (Dropout is identity at inference)
            h = h_all[:, :d2]
            h = jnp.dot(h, w2_ref[...].astype(jnp.float32),
                        preferred_element_type=jnp.float32)
            h = _gelu_exact(h + b2_ref[...].astype(jnp.float32))
            logits = jnp.dot(h, w3_ref[...].astype(jnp.float32),
                             preferred_element_type=jnp.float32)
            logits = logits + b3_ref[...].astype(jnp.float32)
            logits = logits - jnp.max(logits, axis=-1, keepdims=True)
            e = jnp.exp(logits)
            inv_den = pl.reciprocal(jnp.sum(e, axis=-1, keepdims=True),
                                    approx=False)
            probs = e * inv_den                            # (tb, 10)

            # ---- confidence head ----
            c = h_all[:, c_off:c_off + d4]
            c = jnp.dot(c, wc2_ref[...].astype(jnp.float32),
                        preferred_element_type=jnp.float32)
            conf = jax.nn.sigmoid(c + bc2_ref[...].astype(jnp.float32))  # (tb, 1)

            # Single lane-dense 128-wide store; wrapper slices results out.
            pad = jnp.zeros((tb, OUT_WIDTH - NUM_CLASSES - 1), jnp.float32)
            out_ref[...] = jnp.concatenate([probs, conf, pad], axis=-1)

    return kernel


def init_params(key, model_dim, dtype=jnp.float32):
    """Synthetic Linear params; weights stored [in, out], biases [1, out]."""
    d, d2, d4 = model_dim, model_dim // 2, model_dim // 4
    shapes = [
        (d, d2), (1, d2),                      # classifier Linear 1
        (d2, d4), (1, d4),                     # classifier Linear 2
        (d4, NUM_CLASSES), (1, NUM_CLASSES),   # classifier Linear 3
        (d, d4), (1, d4),                      # confidence Linear 1
        (d4, 1), (1, 1),                       # confidence Linear 2
    ]
    keys = jax.random.split(key, len(shapes))
    params = []
    for k, s in zip(keys, shapes):
        fan_in = s[0] if s[0] > 1 else 1
        params.append((jax.random.normal(k, s, jnp.float32)
                       / jnp.sqrt(jnp.float32(fan_in))).astype(dtype))
    return tuple(params)


def _fuse_first_layer(params):
    """Pack W1/Wc1 (and b1/bc1) into one lane-aligned fused first layer."""
    w1, b1, w2, b2, w3, b3, wc1, bc1, wc2, bc2 = params
    d, d2 = w1.shape
    d4 = wc1.shape[1]
    c_off = _round_up(d2, 128)        # confidence chunk starts lane-aligned
    width = c_off + d4
    wf = jnp.zeros((d, width), w1.dtype).at[:, :d2].set(w1)
    wf = wf.at[:, c_off:c_off + d4].set(wc1)
    bf = jnp.zeros((1, width), b1.dtype).at[:, :d2].set(b1)
    bf = bf.at[:, c_off:c_off + d4].set(bc1)
    fused = (wf, bf, w2, b2, w3, b3, wc2, bc2)
    return fused, d2, d4, c_off


def _pick_tb(B):
    """Batch tile: <= 256 rows, multiple of 8, divides B, and B // tb >= 2
    whenever B allows it (so the 'parallel' batch axis shards across the two
    v7x TensorCores)."""
    if B <= 8:
        return B
    start = min(256, max(8, (B // 2) // 8 * 8))
    for cand in range(start, 7, -8):
        if B % cand == 0:
            return cand
    return B


def _pick_ts(S, tb, D, itemsize, target_bytes=2 << 20):
    """Seq tile: divides S, prefers multiples of 16 (bf16 sublane packing),
    sized so the (tb, ts, D) x tile is ~target_bytes -> long contiguous DMA
    bursts and few ~0.35us grid steps while still streaming x."""
    if S <= 16:
        return S
    cap = max(8, target_bytes // max(1, tb * D * itemsize))
    divs = [t for t in range(8, S + 1, 8) if S % t == 0]
    if not divs:
        return S
    under = [t for t in divs if t <= cap]
    if under:
        under16 = [t for t in under if t % 16 == 0]
        return max(under16) if under16 else max(under)
    return min(divs)


def _device_vmem_capacity():
    try:
        return int(pltpu.get_tpu_info().vmem_capacity_bytes)
    except Exception:
        return 64 << 20    # conservative fallback (v7x per-TensorCore VMEM)


def content_type_classifier(token_embeddings, params, *, tb=None, ts=None,
                            x_buffers=None):
    """token_embeddings: [B, S, D] -> (probs [B, 10], confidence [B, 1]).

    token_embeddings may be bf16 (recommended: halves HBM traffic on the
    dominant streaming phase); the kernel accumulates and computes the MLP
    heads in f32.  `x_buffers` optionally deepens the x-tile pipeline (e.g. 3
    on v7x when small tiles expose DMA latency)."""
    B, S, D = token_embeddings.shape
    itemsize = jnp.dtype(token_embeddings.dtype).itemsize

    tb = _pick_tb(B) if tb is None else tb
    ts = _pick_ts(S, tb, D, itemsize) if ts is None else ts
    assert B % tb == 0 and (tb % 8 == 0 or tb == B), \
        "tb must divide B and be a multiple of 8 (or equal B)"
    assert S % ts == 0 and (ts % 8 == 0 or ts == S), \
        "ts must divide S and be a multiple of 8 (or equal S)"

    fused, d2, d4, c_off = _fuse_first_layer(params)
    grid = (B // tb, S // ts)

    if x_buffers is None:
        x_spec = pl.BlockSpec((tb, ts, D), lambda b, s: (b, s, 0))
        n_x_buf = 2
    else:
        x_spec = pl.BlockSpec((tb, ts, D), lambda b, s: (b, s, 0),
                              pipeline_mode=pl.Buffered(x_buffers))
        n_x_buf = x_buffers
    # Weights/biases: full-array blocks, constant index maps, single-buffered
    # -> DMA'd once and resident in VMEM for the whole grid.
    w_specs = [pl.BlockSpec(p.shape, lambda b, s: (0, 0),
                            pipeline_mode=pl.Buffered(1)) for p in fused]
    out_spec = pl.BlockSpec((tb, OUT_WIDTH), lambda b, s: (b, 0))

    weight_bytes = sum(int(p.size) * jnp.dtype(p.dtype).itemsize for p in fused)
    x_tile_bytes = tb * ts * D * itemsize
    out_tile_bytes = tb * OUT_WIDTH * 4
    acc_bytes = tb * D * 4
    vmem_need = (n_x_buf * x_tile_bytes     # multi-buffered x tiles
                 + weight_bytes             # single-buffered resident weights
                 + 2 * out_tile_bytes       # double-buffered output slab
                 + acc_bytes)               # accumulator scratch
    vmem_ceiling = max(16 << 20, _device_vmem_capacity() - (8 << 20))
    vmem_limit = int(min(max(vmem_need + (2 << 20), 16 << 20), vmem_ceiling))

    flops = 2 * B * S * D                                                  # mean
    flops += 2 * B * (D * (c_off + d4) + d2 * d4 + d4 * NUM_CLASSES + d4)  # matmuls
    transcendentals = B * (d2 + 2 * d4 + NUM_CLASSES + 2)
    bytes_accessed = (int(token_embeddings.size) * itemsize + weight_bytes
                      + B * OUT_WIDTH * 4)

    out = pl.pallas_call(
        _make_kernel(tb, d2, d4, c_off, 1.0 / S),
        out_shape=jax.ShapeDtypeStruct((B, OUT_WIDTH), jnp.float32),
        grid_spec=pltpu.PrefetchScalarGridSpec(
            num_scalar_prefetch=0,
            grid=grid,
            in_specs=[x_spec] + w_specs,
            out_specs=out_spec,
            scratch_shapes=[pltpu.VMEM((tb, D), jnp.float32)]),
        compiler_params=pltpu.CompilerParams(
            dimension_semantics=("parallel", "arbitrary"),
            vmem_limit_bytes=vmem_limit),
        cost_estimate=pl.CostEstimate(
            flops=int(flops),
            transcendentals=int(transcendentals),
            bytes_accessed=int(bytes_accessed)),
    )(token_embeddings, *fused)

    probs = out[:, :NUM_CLASSES]
    conf = out[:, NUM_CLASSES:NUM_CLASSES + 1]
    return probs, conf


def _reference(token_embeddings, params):
    w1, b1, w2, b2, w3, b3, wc1, bc1, wc2, bc2 = [
        p.astype(jnp.float32) for p in params]
    r = jnp.mean(token_embeddings.astype(jnp.float32), axis=1)
    h = jax.nn.gelu(r @ w1 + b1, approximate=False)
    h = jax.nn.gelu(h @ w2 + b2, approximate=False)
    probs = jax.nn.softmax(h @ w3 + b3, axis=-1)
    c = jax.nn.gelu(r @ wc1 + bc1, approximate=False)
    conf = jax.nn.sigmoid(c @ wc2 + bc2)
    return probs, conf


if __name__ == "__main__":
    B, S, D = 2, 32, 32     # batch, seq_len, model_dim (small test shapes)
    key = jax.random.PRNGKey(0)
    k_x, k_p = jax.random.split(key)
    x = jax.random.normal(k_x, (B, S, D), jnp.float32)
    params = init_params(k_p, D)   # f32 params so the 1e-5 self-test holds

    ref_probs, ref_conf = _reference(x, params)

    # 1) f32 input, explicit ts=8 -> exercises the streamed seq-reduction
    #    grid (S // ts = 4 steps) and the accumulator init/finalize path.
    probs, conf = content_type_classifier(x, params, ts=8)
    jax.block_until_ready((probs, conf))
    assert probs.shape == (B, NUM_CLASSES) and conf.shape == (B, 1)
    assert jnp.allclose(probs, ref_probs, atol=1e-5, rtol=1e-5), "probs mismatch"
    assert jnp.allclose(conf, ref_conf, atol=1e-5, rtol=1e-5), "confidence mismatch"
    assert jnp.allclose(jnp.sum(probs, axis=-1), 1.0, atol=1e-5)

    # 2) bf16 input (halves HBM traffic on the dominant streaming phase);
    #    the kernel still accumulates / computes the heads in f32, so only a
    #    looser tolerance is expected (bf16 quantization of x).
    probs_bf, conf_bf = content_type_classifier(
        x.astype(jnp.bfloat16), params, ts=16)
    jax.block_until_ready((probs_bf, conf_bf))
    assert jnp.allclose(probs_bf, ref_probs, atol=3e-2, rtol=3e-2), "bf16 probs mismatch"
    assert jnp.allclose(conf_bf, ref_conf, atol=3e-2, rtol=3e-2), "bf16 confidence mismatch"

    # 3) Default (auto) tile selection path.
    probs_auto, conf_auto = content_type_classifier(x, params)
    jax.block_until_ready((probs_auto, conf_auto))
    assert jnp.allclose(probs_auto, ref_probs, atol=1e-5, rtol=1e-5)
    assert jnp.allclose(conf_auto, ref_conf, atol=1e-5, rtol=1e-5)

    print("KERNEL_OK")
</pallas_src>

<mosaic_0001>
module attributes {stable_mosaic.version = 11 : i64} {
  func.func @kernel(%arg0: i32, %arg1: i32, %arg2: memref<2x8x32xf32, #tpu.memory_space<vmem>>, %arg3: memref<32x136xf32, #tpu.memory_space<vmem>>, %arg4: memref<1x136xf32, #tpu.memory_space<vmem>>, %arg5: memref<16x8xf32, #tpu.memory_space<vmem>>, %arg6: memref<1x8xf32, #tpu.memory_space<vmem>>, %arg7: memref<8x10xf32, #tpu.memory_space<vmem>>, %arg8: memref<1x10xf32, #tpu.memory_space<vmem>>, %arg9: memref<8x1xf32, #tpu.memory_space<vmem>>, %arg10: memref<1x1xf32, #tpu.memory_space<vmem>>, %arg11: memref<2x128xf32, #tpu.memory_space<vmem>>, %arg12: memref<2x32xf32, #tpu.memory_space<vmem>>) attributes {dimension_semantics = [#tpu.dimension_semantics<parallel>, #tpu.dimension_semantics<arbitrary>], iteration_bounds = array<i64: 1, 4>, scalar_prefetch = 0 : i64, scratch_operands = 1 : i64, tpu.core_type = #tpu.core_type<tc>, window_params = [{transform_indices = @transform_0, window_bounds = array<i64: 2, 8, 32>}, {pipeline_mode = #tpu.pipeline_mode<synchronous>, transform_indices = @transform_1, window_bounds = array<i64: 32, 136>}, {pipeline_mode = #tpu.pipeline_mode<synchronous>, transform_indices = @transform_2, window_bounds = array<i64: 1, 136>}, {pipeline_mode = #tpu.pipeline_mode<synchronous>, transform_indices = @transform_3, window_bounds = array<i64: 16, 8>}, {pipeline_mode = #tpu.pipeline_mode<synchronous>, transform_indices = @transform_4, window_bounds = array<i64: 1, 8>}, {pipeline_mode = #tpu.pipeline_mode<synchronous>, transform_indices = @transform_5, window_bounds = array<i64: 8, 10>}, {pipeline_mode = #tpu.pipeline_mode<synchronous>, transform_indices = @transform_6, window_bounds = array<i64: 1, 10>}, {pipeline_mode = #tpu.pipeline_mode<synchronous>, transform_indices = @transform_7, window_bounds = array<i64: 8, 1>}, {pipeline_mode = #tpu.pipeline_mode<synchronous>, transform_indices = @transform_8, window_bounds = array<i64: 1, 1>}, {transform_indices = @transform_9, window_bounds = array<i64: 2, 128>}]} {
    %c0_i32 = arith.constant 0 : i32
    %0 = arith.cmpi eq, %arg1, %c0_i32 : i32
    %1 = arith.extui %0 : i1 to i32
    %c0_i32_0 = arith.constant 0 : i32
    %2 = arith.cmpi ne, %1, %c0_i32_0 : i32
    scf.if %2 {
      %cst_8 = arith.constant 0.000000e+00 : f32
      %11 = vector.broadcast %cst_8 : f32 to vector<2x32xf32>
      %c0_9 = arith.constant 0 : index
      %c0_10 = arith.constant 0 : index
      %12 = vector.load %arg12[%c0_9, %c0_10] : memref<2x32xf32, #tpu.memory_space<vmem>>, vector<2x32xf32>
      tpu.vector_store %arg12[%c0_9, %c0_10], %11 {strides = array<i32>} : memref<2x32xf32, #tpu.memory_space<vmem>>, vector<2x32xf32>,
    } else {
    }
    %c0 = arith.constant 0 : index
    %c0_1 = arith.constant 0 : index
    %3 = vector.load %arg12[%c0, %c0_1] : memref<2x32xf32, #tpu.memory_space<vmem>>, vector<2x32xf32>
    %c0_2 = arith.constant 0 : index
    %c0_3 = arith.constant 0 : index
    %c0_4 = arith.constant 0 : index
    %4 = vector.load %arg2[%c0_2, %c0_3, %c0_4] : memref<2x8x32xf32, #tpu.memory_space<vmem>>, vector<2x8x32xf32>
    %cst = arith.constant dense<0.000000e+00> : vector<2x32xf32>
    %5 = vector.multi_reduction <add>, %4, %cst [1] : vector<2x8x32xf32> to vector<2x32xf32>
    %6 = arith.addf %3, %5 : vector<2x32xf32>
    %c0_5 = arith.constant 0 : index
    %c0_6 = arith.constant 0 : index
    %7 = vector.load %arg12[%c0_5, %c0_6] : memref<2x32xf32, #tpu.memory_space<vmem>>, vector<2x32xf32>
    tpu.vector_store %arg12[%c0_5, %c0_6], %6 {strides = array<i32>} : memref<2x32xf32, #tpu.memory_space<vmem>>, vector<2x32xf32>,
    %c3_i32 = arith.constant 3 : i32
    %8 = arith.cmpi eq, %arg1, %c3_i32 : i32
    %9 = arith.extui %8 : i1 to i32
    %c0_i32_7 = arith.constant 0 : i32
    %10 = arith.cmpi ne, %9, %c0_i32_7 : i32
    scf.if %10 {
      %c0_8 = arith.constant 0 : index
      %c0_9 = arith.constant 0 : index
      %11 = vector.load %arg12[%c0_8, %c0_9] : memref<2x32xf32, #tpu.memory_space<vmem>>, vector<2x32xf32>
      %cst_10 = arith.constant 3.125000e-02 : f32
      %12 = vector.broadcast %cst_10 : f32 to vector<2x32xf32>
      %13 = arith.mulf %11, %12 : vector<2x32xf32>
      %c0_11 = arith.constant 0 : index
      %c0_12 = arith.constant 0 : index
      %14 = vector.load %arg3[%c0_11, %c0_12] : memref<32x136xf32, #tpu.memory_space<vmem>>, vector<32x136xf32>
      %cst_13 = arith.constant dense<0.000000e+00> : vector<2x136xf32>
      %15 = tpu.matmul %13, %14, %cst_13 {dimension_numbers = #tpu.dot_dimension_numbers<[1], [0], [0], [1], [0, 0, 1, 1], [], []>} : vector<2x32xf32>, vector<32x136xf32>, vector<2x136xf32> -> vector<2x136xf32>
      %c0_14 = arith.constant 0 : index
      %c0_15 = arith.constant 0 : index
      %16 = vector.load %arg4[%c0_14, %c0_15] : memref<1x136xf32, #tpu.memory_space<vmem>>, vector<1x136xf32>
      %17 = vector.broadcast %16 : vector<1x136xf32> to vector<2x136xf32>
      %18 = arith.addf %15, %17 : vector<2x136xf32>
      %cst_16 = arith.constant 5.000000e-01 : f32
      %19 = vector.broadcast %cst_16 : f32 to vector<2x136xf32>
      %20 = arith.mulf %19, %18 : vector<2x136xf32>
      %cst_17 = arith.constant 0.707106769 : f32
      %21 = vector.broadcast %cst_17 : f32 to vector<2x136xf32>
      %22 = arith.mulf %18, %21 : vector<2x136xf32>
      %23 = math.erf %22 : vector<2x136xf32>
      %cst_18 = arith.constant 1.000000e+00 : f32
      %24 = vector.broadcast %cst_18 : f32 to vector<2x136xf32>
      %25 = arith.addf %24, %23 : vector<2x136xf32>
      %26 = arith.mulf %20, %25 : vector<2x136xf32>
      %27 = vector.extract_strided_slice %26 {offsets = [0, 0], sizes = [2, 16], strides = [1, 1]} : vector<2x136xf32> to vector<2x16xf32>
      %c0_19 = arith.constant 0 : index
      %c0_20 = arith.constant 0 : index
      %28 = vector.load %arg5[%c0_19, %c0_20] : memref<16x8xf32, #tpu.memory_space<vmem>>, vector<16x8xf32>
      %cst_21 = arith.constant dense<0.000000e+00> : vector<2x8xf32>
      %29 = tpu.matmul %27, %28, %cst_21 {dimension_numbers = #tpu.dot_dimension_numbers<[1], [0], [0], [1], [0, 0, 1, 1], [], []>} : vector<2x16xf32>, vector<16x8xf32>, vector<2x8xf32> -> vector<2x8xf32>
      %c0_22 = arith.constant 0 : index
      %c0_23 = arith.constant 0 : index
      %30 = vector.load %arg6[%c0_22, %c0_23] : memref<1x8xf32, #tpu.memory_space<vmem>>, vector<1x8xf32>
      %31 = vector.broadcast %30 : vector<1x8xf32> to vector<2x8xf32>
      %32 = arith.addf %29, %31 : vector<2x8xf32>
      %cst_24 = arith.constant 5.000000e-01 : f32
      %33 = vector.broadcast %cst_24 : f32 to vector<2x8xf32>
      %34 = arith.mulf %33, %32 : vector<2x8xf32>
      %cst_25 = arith.constant 0.707106769 : f32
      %35 = vector.broadcast %cst_25 : f32 to vector<2x8xf32>
      %36 = arith.mulf %32, %35 : vector<2x8xf32>
      %37 = math.erf %36 : vector<2x8xf32>
      %cst_26 = arith.constant 1.000000e+00 : f32
      %38 = vector.broadcast %cst_26 : f32 to vector<2x8xf32>
      %39 = arith.addf %38, %37 : vector<2x8xf32>
      %40 = arith.mulf %34, %39 : vector<2x8xf32>
      %c0_27 = arith.constant 0 : index
      %c0_28 = arith.constant 0 : index
      %41 = vector.load %arg7[%c0_27, %c0_28] : memref<8x10xf32, #tpu.memory_space<vmem>>, vector<8x10xf32>
      %cst_29 = arith.constant dense<0.000000e+00> : vector<2x10xf32>
      %42 = tpu.matmul %40, %41, %cst_29 {dimension_numbers = #tpu.dot_dimension_numbers<[1], [0], [0], [1], [0, 0, 1, 1], [], []>} : vector<2x8xf32>, vector<8x10xf32>, vector<2x10xf32> -> vector<2x10xf32>
      %c0_30 = arith.constant 0 : index
      %c0_31 = arith.constant 0 : index
      %43 = vector.load %arg8[%c0_30, %c0_31] : memref<1x10xf32, #tpu.memory_space<vmem>>, vector<1x10xf32>
      %44 = vector.broadcast %43 : vector<1x10xf32> to vector<2x10xf32>
      %45 = arith.addf %42, %44 : vector<2x10xf32>
      %cst_32 = arith.constant dense<0xFF800000> : vector<2xf32>
      %46 = vector.multi_reduction <maximumf>, %45, %cst_32 [1] : vector<2x10xf32> to vector<2xf32>
      %47 = vector.shape_cast %46 : vector<2xf32> to vector<2x1xf32>
      %48 = vector.broadcast %47 : vector<2x1xf32> to vector<2x10xf32>
      %49 = arith.subf %45, %48 : vector<2x10xf32>
      %50 = math.exp %49 : vector<2x10xf32>
      %cst_33 = arith.constant dense<0.000000e+00> : vector<2xf32>
      %51 = vector.multi_reduction <add>, %50, %cst_33 [1] : vector<2x10xf32> to vector<2xf32>
      %52 = vector.shape_cast %51 : vector<2xf32> to vector<2x1xf32>
      %53 = tpu.reciprocal %52 : vector<2x1xf32> -> vector<2x1xf32>
      %54 = vector.broadcast %53 : vector<2x1xf32> to vector<2x10xf32>
      %55 = arith.mulf %50, %54 : vector<2x10xf32>
      %56 = vector.extract_strided_slice %26 {offsets = [0, 128], sizes = [2, 8], strides = [1, 1]} : vector<2x136xf32> to vector<2x8xf32>
      %c0_34 = arith.constant 0 : index
      %c0_35 = arith.constant 0 : index
      %57 = vector.load %arg9[%c0_34, %c0_35] : memref<8x1xf32, #tpu.memory_space<vmem>>, vector<8x1xf32>
      %cst_36 = arith.constant dense<0.000000e+00> : vector<2x1xf32>
      %58 = tpu.matmul %56, %57, %cst_36 {dimension_numbers = #tpu.dot_dimension_numbers<[1], [0], [0], [1], [0, 0, 1, 1], [], []>} : vector<2x8xf32>, vector<8x1xf32>, vector<2x1xf32> -> vector<2x1xf32>
      %c0_37 = arith.constant 0 : index
      %c0_38 = arith.constant 0 : index
      %59 = vector.load %arg10[%c0_37, %c0_38] : memref<1x1xf32, #tpu.memory_space<vmem>>, vector<1x1xf32>
      %60 = vector.broadcast %59 : vector<1x1xf32> to vector<2x1xf32>
      %61 = arith.addf %58, %60 : vector<2x1xf32>
      %62 = arith.negf %61 : vector<2x1xf32>
      %63 = math.exp %62 : vector<2x1xf32>
      %cst_39 = arith.constant 1.000000e+00 : f32
      %64 = vector.broadcast %cst_39 : f32 to vector<2x1xf32>
      %65 = arith.addf %64, %63 : vector<2x1xf32>
      %66 = arith.divf %64, %65 : vector<2x1xf32>
      %cst_40 = arith.constant 0.000000e+00 : f32
      %67 = vector.broadcast %cst_40 : f32 to vector<2x117xf32>
      %68 = tpu.concatenate %55, %66, %67 in 1 : vector<2x10xf32>, vector<2x1xf32>, vector<2x117xf32> -> vector<2x128xf32>
      %c0_41 = arith.constant 0 : index
      %c0_42 = arith.constant 0 : index
      %69 = vector.load %arg11[%c0_41, %c0_42] : memref<2x128xf32, #tpu.memory_space<vmem>>, vector<2x128xf32>
      tpu.vector_store %arg11[%c0_41, %c0_42], %68 {strides = array<i32>} : memref<2x128xf32, #tpu.memory_space<vmem>>, vector<2x128xf32>,
    } else {
    }
    return
  }
  func.func @transform_0(%arg0: i32, %arg1: i32) -> (i32, i32, i32) {
    %c0_i32 = arith.constant 0 : i32
    %c0_i32_0 = arith.constant 0 : i32
    return %arg0, %arg1, %c0_i32 : i32, i32, i32
  }
  func.func @transform_1(%arg0: i32, %arg1: i32) -> (i32, i32) {
    %c0_i32 = arith.constant 0 : i32
    %c0_i32_0 = arith.constant 0 : i32
    %c0_i32_1 = arith.constant 0 : i32
    return %c0_i32, %c0_i32_0 : i32, i32
  }
  func.func @transform_2(%arg0: i32, %arg1: i32) -> (i32, i32) {
    %c0_i32 = arith.constant 0 : i32
    %c0_i32_0 = arith.constant 0 : i32
    %c0_i32_1 = arith.constant 0 : i32
    return %c0_i32, %c0_i32_0 : i32, i32
  }
  func.func @transform_3(%arg0: i32, %arg1: i32) -> (i32, i32) {
    %c0_i32 = arith.constant 0 : i32
    %c0_i32_0 = arith.constant 0 : i32
    %c0_i32_1 = arith.constant 0 : i32
    return %c0_i32, %c0_i32_0 : i32, i32
  }
  func.func @transform_4(%arg0: i32, %arg1: i32) -> (i32, i32) {
    %c0_i32 = arith.constant 0 : i32
    %c0_i32_0 = arith.constant 0 : i32
    %c0_i32_1 = arith.constant 0 : i32
    return %c0_i32, %c0_i32_0 : i32, i32
  }
  func.func @transform_5(%arg0: i32, %arg1: i32) -> (i32, i32) {
    %c0_i32 = arith.constant 0 : i32
    %c0_i32_0 = arith.constant 0 : i32
    %c0_i32_1 = arith.constant 0 : i32
    return %c0_i32, %c0_i32_0 : i32, i32
  }
  func.func @transform_6(%arg0: i32, %arg1: i32) -> (i32, i32) {
    %c0_i32 = arith.constant 0 : i32
    %c0_i32_0 = arith.constant 0 : i32
    %c0_i32_1 = arith.constant 0 : i32
    return %c0_i32, %c0_i32_0 : i32, i32
  }
  func.func @transform_7(%arg0: i32, %arg1: i32) -> (i32, i32) {
    %c0_i32 = arith.constant 0 : i32
    %c0_i32_0 = arith.constant 0 : i32
    %c0_i32_1 = arith.constant 0 : i32
    return %c0_i32, %c0_i32_0 : i32, i32
  }
  func.func @transform_8(%arg0: i32, %arg1: i32) -> (i32, i32) {
    %c0_i32 = arith.constant 0 : i32
    %c0_i32_0 = arith.constant 0 : i32
    %c0_i32_1 = arith.constant 0 : i32
    return %c0_i32, %c0_i32_0 : i32, i32
  }
  func.func @transform_9(%arg0: i32, %arg1: i32) -> (i32, i32) {
    %c0_i32 = arith.constant 0 : i32
    %c0_i32_0 = arith.constant 0 : i32
    return %arg0, %c0_i32 : i32, i32
  }
}

</mosaic_0001>

<llo_original>
// kernel: tpu_custom_call.1
$region0: #{tpu_custom_call.1}
  #allocation0 [shape = 'u32[]', space=smem, size = 0x4, offset = 0x4, fixed_abs, tag = 'smem constant byte address 0x4 - core index']
  #allocation1 [shape = 'u32[144,128]{1,0:T(1,128)}', space=vmem, size = 0x12000, scoped, tag = 'internal scratch']
  #allocation2 [shape = 'f32[2,32]{1,0:T(2,128)}', space=vmem, size = 0x400, scoped, tag = 'scratch operand']
  #allocation3 [shape = 'f32[1,1]{1,0:T(1,128)S(1)}', space=vmem, size = 0x200, scoped, tag = 'scoped memory for tpu_custom_call.1']
  %s0 = inlined_call_operand.hbm [shape: f32[2,32,32], index: 0, kind: input, shape index: {}]
  %s1 = inlined_call_operand.hbm [shape: f32[32,136], index: 1, kind: input, shape index: {}]
  %s2 = inlined_call_operand.vmem [shape: f32[1,136], index: 2, kind: input, shape index: {}]
  %s3 = inlined_call_operand.vmem [shape: f32[16,8], index: 3, kind: input, shape index: {}]
  %s4 = inlined_call_operand.vmem [shape: f32[1,8], index: 4, kind: input, shape index: {}]
  %s5 = inlined_call_operand.vmem [shape: f32[8,10], index: 5, kind: input, shape index: {}]
  %s6 = inlined_call_operand.vmem [shape: f32[1,10], index: 6, kind: input, shape index: {}]
  %s7 = inlined_call_operand.vmem [shape: f32[8,1], index: 7, kind: input, shape index: {}]
  %s8 = inlined_call_operand.<no memory space> [shape: f32[1,1], index: 8, kind: input, shape index: {}]
  %s9 = inlined_call_operand.hbm [shape: f32[2,128], index: 9, kind: output, shape index: {}]
  %s10 = sld [smem:[#allocation0]]
  $region85: #{tpu_custom_call.1} parent=0
    _
  %s12 = ssub.s32 1, %s10
  %s13 = scalar_select 0, %s12, %s10
  %v14 = vstv %s8
  %15 = vst [vmem:[#allocation3] sm:$0x1] %v14
  $region1: #{tpu_custom_call.1} parent=0
    #allocation4 [shape = 'u8[16384]{0}', space=vmem, size = 0x4000, scoped, tag = 'input window, operand 0']
    #allocation5 [shape = 's32[2]{0}', space=sflag, size = 0x8, scoped, tag = 'scoped memory for tpu_custom_call.1']
    #allocation6 [shape = 's32[2]{0}', space=sflag, size = 0x8, scoped, tag = 'scoped memory for tpu_custom_call.1']
    #allocation7 [shape = 'u8[32768]{0}', space=vmem, size = 0x8000, scoped, tag = 'input window, operand 1, single buffered']
    #allocation8 [shape = 's32[1]{0}', space=sflag, size = 0x4, scoped, tag = 'scoped memory for tpu_custom_call.1']
    #allocation9 [shape = 'u8[1024]{0}', space=vmem, size = 0x400, scoped, tag = 'output window, operand 0, single buffered']
    %16 = vsyncpa [#allocation5], 0
    %s17 = scalar_lea.sflag [#allocation5], 1
    %18 = vsyncpa %s17, 0
    %19 = vsyncpa [#allocation8], 0
    %20 = vsyncpa [#allocation6], 0
    loop: start=0, step=1, limit=6
    $region2: #{tpu_custom_call.1} parent=1 // loop_pre_header
      _
    $region3: #{tpu_custom_call.1} parent=1 // loop_header
      %s22 = sphi 0, %s26
      %p23 = scmp.ge.s32.totalorder %s22, 6
      %s29 = sphi 0, %s41
      %s30 = sphi 0, %s37
      %s31 = sphi 0, %s29
      %s32 = sphi 0, %s30
      %s33 = sphi 0, %s31
      %s34 = sphi 0, %s32
      %s46 = sphi 0, %s48
      %s49 = sphi 0, %s46
      %s50 = sphi 0, %s49
      %s66 = sphi 0, %s50
      %s70 = sphi 0, %s70
      %s72 = sphi 0, %s70
      %s73 = sphi 0, %s72
      %s87 = sphi 0, %s73
      %s91 = sphi 0, %s91
      %s93 = sphi 0, %s91
      %s94 = sphi 0, %s93
      %s108 = sphi 0, %s94
      %s112 = sphi 0, %s112
      %s114 = sphi 0, %s112
      %s115 = sphi 0, %s114
      %s129 = sphi 0, %s115
      %s133 = sphi 0, %s133
      %s135 = sphi 0, %s133
      %s136 = sphi 0, %s135
      %s150 = sphi 0, %s136
      %s154 = sphi 0, %s154
      %s156 = sphi 0, %s154
      %s157 = sphi 0, %s156
      %s171 = sphi 0, %s157
      %s175 = sphi 0, %s175
      %s177 = sphi 0, %s175
      %s178 = sphi 0, %s177
      %s192 = sphi 0, %s178
      %s196 = sphi 0, %s196
      %s198 = sphi 0, %s196
      %s199 = sphi 0, %s198
      %s213 = sphi 0, %s199
      %s217 = sphi 0, %s217
      %s219 = sphi 0, %s217
      %s220 = sphi 0, %s219
      %s234 = sphi 0, %s220
      %s240 = sphi 0, %s242
      %s243 = sphi 0, %s240
      %s244 = sphi 0, %s243
      %s260 = sphi 0, %s244
    $region4: #{tpu_custom_call.1} parent=1 // loop_header_branch
      %25 = sbr.rel (%p23) target = $region8
    $region5: #{tpu_custom_call.1} parent=1 // loop_body
      %s27 = ssub.s32 %s22, 1
      %s28 = ssub.s32 %s22, 2
      %s35 = sadd.s32 1, %s30
      %p36 = scmp.ge.s32.totalorder %s35, 4
      %s37 = scalar_select %p36, 0, %s35
      %s38 = sadd.s32 1, %s29
      %s39 = scalar_select %p36, %s38, %s29
      %p40 = scmp.ge.s32.totalorder %s39, 1
      %s41 = scalar_select %p40, 0, %s39
      %s42 = ssub.s32 %s29, %s41
      %s43 = ssub.s32 %s30, %s37
      %s44 = sor.u32 %s42, %s43
      %p45 = scmp.eq.s32.totalorder %s44, 0
      %s47 = sadd.s32 %s46, 1
      %s48 = scalar_select %p45, %s46, %s47
      %p51 = pneg %p45
      %p52 = scmp.eq.s32.totalorder %s22, 3
      %p53 = por %p51, %p52
      %p54 = scmp.ne.s32.totalorder %s46, %s49
      %p55 = scmp.eq.s32.totalorder %s22, 0
      %p56 = por %p54, %p55
      %p57 = scmp.ne.s32.totalorder %s46, %s49
      %p58 = scmp.eq.s32.totalorder %s27, 3
      %p59 = por %p57, %p58
      %p60 = scmp.ne.s32.totalorder %s49, %s50
      %p61 = scmp.eq.s32.totalorder %s27, 0
      %p62 = por %p60, %p61
      %p63 = scmp.ne.s32.totalorder %s49, %s50
      %p64 = scmp.eq.s32.totalorder %s28, 3
      %p65 = por %p63, %p64
      %p67 = scmp.ne.s32.totalorder %s50, %s66
      %p68 = scmp.eq.s32.totalorder %s28, 0
      %p69 = por %p67, %p68
      %s71 = sadd.s32 %s70, 1
      %p74 = scmp.eq.s32.totalorder %s22, 3
      %p75 = scmp.ne.s32.totalorder %s70, %s72
      %p76 = scmp.eq.s32.totalorder %s22, 0
      %p77 = por %p75, %p76
      %p78 = scmp.ne.s32.totalorder %s70, %s72
      %p79 = scmp.eq.s32.totalorder %s27, 3
      %p80 = por %p78, %p79
      %p81 = scmp.ne.s32.totalorder %s72, %s73
      %p82 = scmp.eq.s32.totalorder %s27, 0
      %p83 = por %p81, %p82
      %p84 = scmp.ne.s32.totalorder %s72, %s73
      %p85 = scmp.eq.s32.totalorder %s28, 3
      %p86 = por %p84, %p85
      %p88 = scmp.ne.s32.totalorder %s73, %s87
      %p89 = scmp.eq.s32.totalorder %s28, 0
      %p90 = por %p88, %p89
      %s92 = sadd.s32 %s91, 1
      %p95 = scmp.eq.s32.totalorder %s22, 3
      %p96 = scmp.ne.s32.totalorder %s91, %s93
      %p97 = scmp.eq.s32.totalorder %s22, 0
      %p98 = por %p96, %p97
      %p99 = scmp.ne.s32.totalorder %s91, %s93
      %p100 = scmp.eq.s32.totalorder %s27, 3
      %p101 = por %p99, %p100
      %p102 = scmp.ne.s32.totalorder %s93, %s94
      %p103 = scmp.eq.s32.totalorder %s27, 0
      %p104 = por %p102, %p103
      %p105 = scmp.ne.s32.totalorder %s93, %s94
      %p106 = scmp.eq.s32.totalorder %s28, 3
      %p107 = por %p105, %p106
      %p109 = scmp.ne.s32.totalorder %s94, %s108
      %p110 = scmp.eq.s32.totalorder %s28, 0
      %p111 = por %p109, %p110
      %s113 = sadd.s32 %s112, 1
      %p116 = scmp.eq.s32.totalorder %s22, 3
      %p117 = scmp.ne.s32.totalorder %s112, %s114
      %p118 = scmp.eq.s32.totalorder %s22, 0
      %p119 = por %p117, %p118
      %p120 = scmp.ne.s32.totalorder %s112, %s114
      %p121 = scmp.eq.s32.totalorder %s27, 3
      %p122 = por %p120, %p121
      %p123 = scmp.ne.s32.totalorder %s114, %s115
      %p124 = scmp.eq.s32.totalorder %s27, 0
      %p125 = por %p123, %p124
      %p126 = scmp.ne.s32.totalorder %s114, %s115
      %p127 = scmp.eq.s32.totalorder %s28, 3
      %p128 = por %p126, %p127
      %p130 = scmp.ne.s32.totalorder %s115, %s129
      %p131 = scmp.eq.s32.totalorder %s28, 0
      %p132 = por %p130, %p131
      %s134 = sadd.s32 %s133, 1
      %p137 = scmp.eq.s32.totalorder %s22, 3
      %p138 = scmp.ne.s32.totalorder %s133, %s135
      %p139 = scmp.eq.s32.totalorder %s22, 0
      %p140 = por %p138, %p139
      %p141 = scmp.ne.s32.totalorder %s133, %s135
      %p142 = scmp.eq.s32.totalorder %s27, 3
      %p143 = por %p141, %p142
      %p144 = scmp.ne.s32.totalorder %s135, %s136
      %p145 = scmp.eq.s32.totalorder %s27, 0
      %p146 = por %p144, %p145
      %p147 = scmp.ne.s32.totalorder %s135, %s136
      %p148 = scmp.eq.s32.totalorder %s28, 3
      %p149 = por %p147, %p148
      %p151 = scmp.ne.s32.totalorder %s136, %s150
      %p152 = scmp.eq.s32.totalorder %s28, 0
      %p153 = por %p151, %p152
      %s155 = sadd.s32 %s154, 1
      %p158 = scmp.eq.s32.totalorder %s22, 3
      %p159 = scmp.ne.s32.totalorder %s154, %s156
      %p160 = scmp.eq.s32.totalorder %s22, 0
      %p161 = por %p159, %p160
      %p162 = scmp.ne.s32.totalorder %s154, %s156
      %p163 = scmp.eq.s32.totalorder %s27, 3
      %p164 = por %p162, %p163
      %p165 = scmp.ne.s32.totalorder %s156, %s157
      %p166 = scmp.eq.s32.totalorder %s27, 0
      %p167 = por %p165, %p166
      %p168 = scmp.ne.s32.totalorder %s156, %s157
      %p169 = scmp.eq.s32.totalorder %s28, 3
      %p170 = por %p168, %p169
      %p172 = scmp.ne.s32.totalorder %s157, %s171
      %p173 = scmp.eq.s32.totalorder %s28, 0
      %p174 = por %p172, %p173
      %s176 = sadd.s32 %s175, 1
      %p179 = scmp.eq.s32.totalorder %s22, 3
      %p180 = scmp.ne.s32.totalorder %s175, %s177
      %p181 = scmp.eq.s32.totalorder %s22, 0
      %p182 = por %p180, %p181
      %p183 = scmp.ne.s32.totalorder %s175, %s177
      %p184 = scmp.eq.s32.totalorder %s27, 3
      %p185 = por %p183, %p184
      %p186 = scmp.ne.s32.totalorder %s177, %s178
      %p187 = scmp.eq.s32.totalorder %s27, 0
      %p188 = por %p186, %p187
      %p189 = scmp.ne.s32.totalorder %s177, %s178
      %p190 = scmp.eq.s32.totalorder %s28, 3
      %p191 = por %p189, %p190
      %p193 = scmp.ne.s32.totalorder %s178, %s192
      %p194 = scmp.eq.s32.totalorder %s28, 0
      %p195 = por %p193, %p194
      %s197 = sadd.s32 %s196, 1
      %p200 = scmp.eq.s32.totalorder %s22, 3
      %p201 = scmp.ne.s32.totalorder %s196, %s198
      %p202 = scmp.eq.s32.totalorder %s22, 0
      %p203 = por %p201, %p202
      %p204 = scmp.ne.s32.totalorder %s196, %s198
      %p205 = scmp.eq.s32.totalorder %s27, 3
      %p206 = por %p204, %p205
      %p207 = scmp.ne.s32.totalorder %s198, %s199
      %p208 = scmp.eq.s32.totalorder %s27, 0
      %p209 = por %p207, %p208
      %p210 = scmp.ne.s32.totalorder %s198, %s199
      %p211 = scmp.eq.s32.totalorder %s28, 3
      %p212 = por %p210, %p211
      %p214 = scmp.ne.s32.totalorder %s199, %s213
      %p215 = scmp.eq.s32.totalorder %s28, 0
      %p216 = por %p214, %p215
      %s218 = sadd.s32 %s217, 1
      %p221 = scmp.eq.s32.totalorder %s22, 3
      %p222 = scmp.ne.s32.totalorder %s217, %s219
      %p223 = scmp.eq.s32.totalorder %s22, 0
      %p224 = por %p222, %p223
      %p225 = scmp.ne.s32.totalorder %s217, %s219
      %p226 = scmp.eq.s32.totalorder %s27, 3
      %p227 = por %p225, %p226
      %p228 = scmp.ne.s32.totalorder %s219, %s220
      %p229 = scmp.eq.s32.totalorder %s27, 0
      %p230 = por %p228, %p229
      %p231 = scmp.ne.s32.totalorder %s219, %s220
      %p232 = scmp.eq.s32.totalorder %s28, 3
      %p233 = por %p231, %p232
      %p235 = scmp.ne.s32.totalorder %s220, %s234
      %p236 = scmp.eq.s32.totalorder %s28, 0
      %p237 = por %p235, %p236
      %s238 = ssub.s32 %s29, %s41
      %p239 = scmp.eq.s32.totalorder %s238, 0
      %s241 = sadd.s32 %s240, 1
      %s242 = scalar_select %p239, %s240, %s241
      %p245 = pneg %p239
      %p246 = scmp.eq.s32.totalorder %s22, 3
      %p247 = por %p245, %p246
      %p248 = scmp.ne.s32.totalorder %s240, %s243
      %p249 = scmp.eq.s32.totalorder %s22, 0
      %p250 = por %p248, %p249
      %p251 = scmp.ne.s32.totalorder %s240, %s243
      %p252 = scmp.eq.s32.totalorder %s27, 3
      %p253 = por %p251, %p252
      %p254 = scmp.ne.s32.totalorder %s243, %s244
      %p255 = scmp.eq.s32.totalorder %s27, 0
      %p256 = por %p254, %p255
      %p257 = scmp.ne.s32.totalorder %s243, %s244
      %p258 = scmp.eq.s32.totalorder %s28, 3
      %p259 = por %p257, %p258
      %p261 = scmp.ne.s32.totalorder %s244, %s260
      %p262 = scmp.eq.s32.totalorder %s28, 0
      %p263 = por %p261, %p262
      %p264 = scmp.le.s32.totalorder 1, %s22
      %p265 = scmp.lt.s32.totalorder %s22, 5
      %p266 = pnand %p264, %p265
      %p267 = pneg %p266
      // Predicated region
      $region9: #{tpu_custom_call.1} parent=5 // pred_check
        _
      $region10: #{tpu_custom_call.1} parent=5 // pred_check_branch
        %269 = sbr.rel (%p266) target = $region12
      $region11: #{tpu_custom_call.1} parent=5 // pred_region
        %s270 = ssub.s32 %s22, 1
        // Predicated region
        $region13: #{tpu_custom_call.1} parent=11 // pred_check
          %p271 = pneg %p83
        $region14: #{tpu_custom_call.1} parent=11 // pred_check_branch
          %273 = sbr.rel (%p271) target = $region16
        $region15: #{tpu_custom_call.1} parent=11 // pred_region
          %s275 = ssub.s32 1024, 1024
          %276 = vsyncadd [#allocation8], %s275
          %s277 = sshll.u32 [#allocation7], 4
          %s278 = int_to_ptr.vmem [resolvable:$true] %s277
          %283 = dma.hbm_to_vmem [thread:$0]  %s1, 1024, %s278, [#allocation8], 256, 256, 16
        $region16: #{tpu_custom_call.1} parent=11 // pred_fallthru
          _
        // Predicated region
        $region17: #{tpu_custom_call.1} parent=11 // pred_check
          %p284 = pneg %p104
        $region18: #{tpu_custom_call.1} parent=11 // pred_check_branch
          %286 = sbr.rel (%p284) target = $region20
        $region19: #{tpu_custom_call.1} parent=11 // pred_region
          _
        $region20: #{tpu_custom_call.1} parent=11 // pred_fallthru
          _
        // Predicated region
        $region21: #{tpu_custom_call.1} parent=11 // pred_check
          %p287 = pneg %p125
        $region22: #{tpu_custom_call.1} parent=11 // pred_check_branch
          %289 = sbr.rel (%p287) target = $region24
        $region23: #{tpu_custom_call.1} parent=11 // pred_region
          _
        $region24: #{tpu_custom_call.1} parent=11 // pred_fallthru
          _
        // Predicated region
        $region25: #{tpu_custom_call.1} parent=11 // pred_check
          %p290 = pneg %p146
        $region26: #{tpu_custom_call.1} parent=11 // pred_check_branch
          %292 = sbr.rel (%p290) target = $region28
        $region27: #{tpu_custom_call.1} parent=11 // pred_region
          _
        $region28: #{tpu_custom_call.1} parent=11 // pred_fallthru
          _
        // Predicated region
        $region29: #{tpu_custom_call.1} parent=11 // pred_check
          %p293 = pneg %p167
        $region30: #{tpu_custom_call.1} parent=11 // pred_check_branch
          %295 = sbr.rel (%p293) target = $region32
        $region31: #{tpu_custom_call.1} parent=11 // pred_region
          _
        $region32: #{tpu_custom_call.1} parent=11 // pred_fallthru
          _
        // Predicated region
        $region33: #{tpu_custom_call.1} parent=11 // pred_check
          %p296 = pneg %p188
        $region34: #{tpu_custom_call.1} parent=11 // pred_check_branch
          %298 = sbr.rel (%p296) target = $region36
        $region35: #{tpu_custom_call.1} parent=11 // pred_region
          _
        $region36: #{tpu_custom_call.1} parent=11 // pred_fallthru
          _
        // Predicated region
        $region37: #{tpu_custom_call.1} parent=11 // pred_check
          %p299 = pneg %p209
        $region38: #{tpu_custom_call.1} parent=11 // pred_check_branch
          %301 = sbr.rel (%p299) target = $region40
        $region39: #{tpu_custom_call.1} parent=11 // pred_region
          _
        $region40: #{tpu_custom_call.1} parent=11 // pred_fallthru
          _
        // Predicated region
        $region41: #{tpu_custom_call.1} parent=11 // pred_check
          %p302 = pneg %p230
        $region42: #{tpu_custom_call.1} parent=11 // pred_check_branch
          %304 = sbr.rel (%p302) target = $region44
        $region43: #{tpu_custom_call.1} parent=11 // pred_region
          _
        $region44: #{tpu_custom_call.1} parent=11 // pred_fallthru
          _
      $region12: #{tpu_custom_call.1} parent=5 // pred_fallthru
        _
      %p305 = scmp.lt.s32.totalorder %s22, 4
      // Predicated region
      $region45: #{tpu_custom_call.1} parent=5 // pred_check
        %p306 = pneg %p305
      $region46: #{tpu_custom_call.1} parent=5 // pred_check_branch
        %308 = sbr.rel (%p306) target = $region48
      $region47: #{tpu_custom_call.1} parent=5 // pred_region
        // Predicated region
        $region49: #{tpu_custom_call.1} parent=47 // pred_check
          %p309 = pneg %p56
        $region50: #{tpu_custom_call.1} parent=47 // pred_check_branch
          %311 = sbr.rel (%p309) target = $region52
        $region51: #{tpu_custom_call.1} parent=47 // pred_region
          %s312 = sand.u32 %s46, 1
          %s313 = scalar_lea.sflag [#allocation5], %s312
          %s314 = sand.u32 %s46, 1
          %s315 = smul.addr %s314, 16
          %s316 = scalar_lea.vmem [#allocation4], %s315
          %s317 = smul.u32 2, %s29
          %s319 = ssub.s32 256, 256
          %320 = vsyncadd %s313, %s319
          %s321 = smul.addr %s317, 4
          %s322 = sadd.s32 %s30, %s321
          %s323 = smul.addr %s322, 128
          %s324 = scalar_lea.hbm %s0, %s323
          %s325 = sshll.u32 %s316, 4
          %s326 = int_to_ptr.vmem [resolvable:$true] %s325
          %331 = dma.hbm_to_vmem [thread:$0]  %s324, 256, %s326, %s313, 512, 128, 8
        $region52: #{tpu_custom_call.1} parent=47 // pred_fallthru
          _
      $region48: #{tpu_custom_call.1} parent=5 // pred_fallthru
        _
      %p332 = scmp.le.s32.totalorder 1, %s22
      %p333 = scmp.lt.s32.totalorder %s22, 5
      %p334 = pnand %p332, %p333
      %p335 = pneg %p334
      // Predicated region
      $region53: #{tpu_custom_call.1} parent=5 // pred_check
        _
      $region54: #{tpu_custom_call.1} parent=5 // pred_check_branch
        %337 = sbr.rel (%p334) target = $region56
      $region55: #{tpu_custom_call.1} parent=5 // pred_region
        %s338 = ssub.s32 %s22, 1
        %s339 = sand.u32 %s49, 1
        %s340 = scalar_lea.sflag [#allocation5], %s339
        %s341 = sand.u32 %s49, 1
        %s342 = smul.addr %s341, 16
        %s343 = scalar_lea.vmem [#allocation4], %s342
        // Predicated region
        $region57: #{tpu_custom_call.1} parent=55 // pred_check
          %p344 = pneg %p62
        $region58: #{tpu_custom_call.1} parent=55 // pred_check_branch
          %346 = sbr.rel (%p344) target = $region60
        $region59: #{tpu_custom_call.1} parent=55 // pred_region
          %347 = dma.done %s340, 256
        $region60: #{tpu_custom_call.1} parent=55 // pred_fallthru
          _
        // Predicated region
        $region61: #{tpu_custom_call.1} parent=55 // pred_check
          %p348 = pneg %p83
        $region62: #{tpu_custom_call.1} parent=55 // pred_check_branch
          %350 = sbr.rel (%p348) target = $region64
        $region63: #{tpu_custom_call.1} parent=55 // pred_region
          %351 = dma.done [#allocation8], 1024
        $region64: #{tpu_custom_call.1} parent=55 // pred_fallthru
          _
        %s352 = sand.u32 %s49, 1
        %s353 = scalar_lea.sflag [#allocation5], %s352
        %s354 = sand.u32 %s49, 1
        %s355 = smul.addr %s354, 16
        %s356 = scalar_lea.vmem [#allocation4], %s355
        %p357 = pneg %p62
        %p358 = pneg %p59
        %p359 = pneg %p83
        %p360 = pneg %p80
        %p361 = pneg %p104
        %p362 = pneg %p101
        %p363 = pneg %p125
        %p364 = pneg %p122
        %p365 = pneg %p146
        %p366 = pneg %p143
        %p367 = pneg %p167
        %p368 = pneg %p164
        %p369 = pneg %p188
        %p370 = pneg %p185
        %p371 = pneg %p209
        %p372 = pneg %p206
        %p373 = pneg %p230
        %p374 = pneg %p227
        %p375 = pneg %p256
        %p376 = pneg %p253
        %s377 = smul.u32 2, %s31
        %p378 = scmp.eq.s32.totalorder %s32, 0
        // Predicated region
        $region65: #{tpu_custom_call.1} parent=55 // pred_check
          %p379 = pneg %p378
        $region66: #{tpu_custom_call.1} parent=55 // pred_check_branch
          %381 = sbr.rel (%p379) target = $region68
        $region67: #{tpu_custom_call.1} parent=55 // pred_region
          %vm382 = vcmask 254976
          %383 = vst.msk [vmem:[#allocation2] sm:$0x3] %vm382, 0.0
        $region68: #{tpu_custom_call.1} parent=55 // pred_fallthru
          _
        %v384 = vld [vmem:[#allocation2] sm:$0x3]
        %v385 = vld [vmem:[%s343] sm:$0xff]
        %v386 = vld [vmem:[%s343 + $0x8] sm:$0xff]
        %vm387 = vcmask 261120
        %v388 = vsel %vm387, %v385, 0.0
        %v389 = vrot.slane %v388, 4
        %v390 = vadd.f32 %v388, %v389
        %v391 = vrot.slane %v390, 2
        %v392 = vadd.f32 %v390, %v391
        %v393 = vrot.slane %v392, 1
        %v394 = vadd.f32 %v392, %v393
        %v395 = vsel %vm387, %v386, 0.0
        %v396 = vrot.slane %v395, 4
        %v397 = vadd.f32 %v395, %v396
        %v398 = vrot.slane %v397, 2
        %v399 = vadd.f32 %v397, %v398
        %v400 = vrot.slane %v399, 1
        %v401 = vadd.f32 %v399, %v400
        %vm404 = vcmask 1041409
        %v405 = vsel %vm404, %v401, %v394
        %v407 = vadd.f32 %v384, %v405
        %vm408 = vcmask 254976
        %409 = vst.msk [vmem:[#allocation2] sm:$0x3] %vm408, %v407
        %p410 = scmp.eq.s32.totalorder %s32, 3
        // Predicated region
        $region69: #{tpu_custom_call.1} parent=55 // pred_check
          %p411 = pneg %p410
        $region70: #{tpu_custom_call.1} parent=55 // pred_check_branch
          %413 = sbr.rel (%p411) target = $region72
        $region71: #{tpu_custom_call.1} parent=55 // pred_region
          %v414 = vld [vmem:[#allocation2] sm:$0x3]
          %v415 = vmul.f32 %v414, 0.03125
          %v416 = vld [vmem:[#allocation7] sm:$0xff]
          %v417 = vld [vmem:[#allocation7 + $0x8] sm:$0xff]
          %v418 = vld [vmem:[#allocation7 + $0x10] sm:$0xff]
          %v419 = vld [vmem:[#allocation7 + $0x18] sm:$0xff]
          %v420 = vld [vmem:[#allocation7 + $0x20] sm:$0xff]
          %v421 = vld [vmem:[#allocation7 + $0x28] sm:$0xff]
          %v422 = vld [vmem:[#allocation7 + $0x30] sm:$0xff]
          %v423 = vld [vmem:[#allocation7 + $0x38] sm:$0xff]
          %v424 = vld [vmem:[%s2] sm:$0x3]
          %v426 = vlaneseq
          %v427 = vshrl.u32 %v426, 7
          %v428 = vsub.s32 0, %v427
          %v429 = vrot.slane %v424, %v428
          %v430 = vlaneseq
          %v431 = vshrl.u32 %v430, 7
          %v432 = vsub.s32 1, %v431
          %v433 = vrot.slane %v424, %v432
          %v437 = vsel %vm387, %v415, 0
          %439 = vmatprep.subr.mxu0 %v417
          %440 = vmatpush1.msra.mxu0 %v416
          %441 = vmatprep.subr.mxu0 %v419
          %442 = vmatpush1.msra.mxu0 %v418
          %443 = vmatprep.subr.mxu0 %v421
          %444 = vmatpush1.msra.mxu0 %v420
          %445 = vmatprep.subr.mxu0 %v423
          %446 = vmatpush1.msra.mxu0 %v422
          %447 = vmatprep.subr.mxu0 0.0
          %448 = vmatpush1.msra.mxu0 0.0
          %449 = vmatprep.subr.mxu0 0.0
          %450 = vmatpush1.msra.mxu0 0.0
          %451 = vmatprep.subr.mxu0 0.0
          %452 = vmatpush1.msra.mxu0 0.0
          %453 = vmatprep.subr.mxu0 0.0
          %454 = vmatpush1.msra.mxu0 0.0
          %455 = vmatprep.subr.mxu0 0.0
          %456 = vmatpush1.msra.mxu0 0.0
          %457 = vmatprep.subr.mxu0 0.0
          %458 = vmatpush1.msra.mxu0 0.0
          %459 = vmatprep.subr.mxu0 0.0
          %460 = vmatpush1.msra.mxu0 0.0
          %461 = vmatprep.subr.mxu0 0.0
          %462 = vmatpush1.msra.mxu0 0.0
          %463 = vmatprep.subr.mxu0 0.0
          %464 = vmatpush1.msra.mxu0 0.0
          %465 = vmatprep.subr.mxu0 0.0
          %466 = vmatpush1.msra.mxu0 0.0
          %467 = vmatprep.subr.mxu0 0.0
          %468 = vmatpush1.msra.mxu0 0.0
          %469 = vmatprep.subr.mxu0 0.0
          %470 = vmatpush1.msra.mxu0 0.0
          %471 = vmatprep.subr.mxu0 0.0
          %472 = vmatpush1.msra.mxu0 0.0
          %473 = vmatprep.subr.mxu0 0.0
          %474 = vmatpush1.msra.mxu0 0.0
          %475 = vmatprep.subr.mxu0 0.0
          %476 = vmatpush1.msra.mxu0 0.0
          %477 = vmatprep.subr.mxu0 0.0
          %478 = vmatpush1.msra.mxu0 0.0
          %479 = vmatprep.subr.mxu0 0.0
          %480 = vmatpush1.msra.mxu0 0.0
          %481 = vmatprep.subr.mxu0 0.0
          %482 = vmatpush1.msra.mxu0 0.0
          %483 = vmatprep.subr.mxu0 0.0
          %484 = vmatpush1.msra.mxu0 0.0
          %485 = vmatprep.subr.mxu0 0.0
          %486 = vmatpush1.msra.mxu0 0.0
          %487 = vmatprep.subr.mxu0 0.0
          %488 = vmatpush1.msra.mxu0 0.0
          %489 = vmatprep.subr.mxu0 0.0
          %490 = vmatpush1.msra.mxu0 0.0
          %491 = vmatprep.subr.mxu0 0.0
          %492 = vmatpush1.msra.mxu0 0.0
          %493 = vmatprep.subr.mxu0 0.0
          %494 = vmatpush1.msra.mxu0 0.0
          %495 = vmatprep.subr.mxu0 0.0
          %496 = vmatpush1.msra.mxu0 0.0
          %497 = vmatprep.subr.mxu0 0.0
          %498 = vmatpush1.msra.mxu0 0.0
          %499 = vmatprep.subr.mxu0 0.0
          %500 = vmatpush1.msra.mxu0 0.0
          %501 = vmatprep.subr.mxu0 0.0
          %502 = vmatpush1.msra.mxu0 0.0
          %503 = vmatprep.mubr.f32.mxu0 0.0
          %504 = vmatmul.mubr.f32.gmra.mrb[0].mxu0 %v437
          %v505 = vpop.f32.mrb[0].mxu0
          %v506 = vadd.f32 %v429, %v505
          %v507 = vpop.f32.mrb[0].mxu0
          %v508 = vadd.f32 %v433, %v507
          %509 = vdwg.mxu0
          %v510 = vmul.f32 %v506, 0.5
          %v511 = vmul.f32 %v508, 0.5
          %v512 = vmul.f32 %v506, 0.70710677
          %v513 = vmul.f32 %v508, 0.70710677
          %v514 = verf.f32.pop %v512
          %v515 = verf.f32.pop %v513
          %v516 = vadd.f32 %v514, 1.0
          %v517 = vadd.f32 %v515, 1.0
          %v518 = vmul.f32 %v510, %v516
          %v519 = vmul.f32 %v511, %v517
          %v520 = vld [vmem:[%s3] sm:$0xff]
          %v521 = vld [vmem:[%s3 + $0x8] sm:$0xff]
          %v522 = vld [vmem:[%s4] sm:$0x1]
          %v524 = vlaneseq
          %v525 = vshrl.u32 %v524, 7
          %v526 = vsub.s32 0, %v525
          %v527 = vrot.slane %v522, %v526
          %vm529 = vcmask 130048
          %v531 = vsel %vm529, %v518, 0
          %533 = vmatprep.subr.mxu0 0.0
          %534 = vmatpush1.msra.mxu0 %v520
          %535 = vmatprep.subr.mxu0 0.0
          %536 = vmatpush1.msra.mxu0 %v521
          %537 = vmatprep.subr.mxu0 0.0
          %538 = vmatpush1.msra.mxu0 0.0
          %539 = vmatprep.subr.mxu0 0.0
          %540 = vmatpush1.msra.mxu0 0.0
          %541 = vmatprep.subr.mxu0 0.0
          %542 = vmatpush1.msra.mxu0 0.0
          %543 = vmatprep.subr.mxu0 0.0
          %544 = vmatpush1.msra.mxu0 0.0
          %545 = vmatprep.subr.mxu0 0.0
          %546 = vmatpush1.msra.mxu0 0.0
          %547 = vmatprep.subr.mxu0 0.0
          %548 = vmatpush1.msra.mxu0 0.0
          %549 = vmatprep.subr.mxu0 0.0
          %550 = vmatpush1.msra.mxu0 0.0
          %551 = vmatprep.subr.mxu0 0.0
          %552 = vmatpush1.msra.mxu0 0.0
          %553 = vmatprep.subr.mxu0 0.0
          %554 = vmatpush1.msra.mxu0 0.0
          %555 = vmatprep.subr.mxu0 0.0
          %556 = vmatpush1.msra.mxu0 0.0
          %557 = vmatprep.subr.mxu0 0.0
          %558 = vmatpush1.msra.mxu0 0.0
          %559 = vmatprep.subr.mxu0 0.0
          %560 = vmatpush1.msra.mxu0 0.0
          %561 = vmatprep.subr.mxu0 0.0
          %562 = vmatpush1.msra.mxu0 0.0
          %563 = vmatprep.subr.mxu0 0.0
          %564 = vmatpush1.msra.mxu0 0.0
          %565 = vmatprep.subr.mxu0 0.0
          %566 = vmatpush1.msra.mxu0 0.0
          %567 = vmatprep.subr.mxu0 0.0
          %568 = vmatpush1.msra.mxu0 0.0
          %569 = vmatprep.subr.mxu0 0.0
          %570 = vmatpush1.msra.mxu0 0.0
          %571 = vmatprep.subr.mxu0 0.0
          %572 = vmatpush1.msra.mxu0 0.0
          %573 = vmatprep.subr.mxu0 0.0
          %574 = vmatpush1.msra.mxu0 0.0
          %575 = vmatprep.subr.mxu0 0.0
          %576 = vmatpush1.msra.mxu0 0.0
          %577 = vmatprep.subr.mxu0 0.0
          %578 = vmatpush1.msra.mxu0 0.0
          %579 = vmatprep.subr.mxu0 0.0
          %580 = vmatpush1.msra.mxu0 0.0
          %581 = vmatprep.subr.mxu0 0.0
          %582 = vmatpush1.msra.mxu0 0.0
          %583 = vmatprep.subr.mxu0 0.0
          %584 = vmatpush1.msra.mxu0 0.0
          %585 = vmatprep.subr.mxu0 0.0
          %586 = vmatpush1.msra.mxu0 0.0
          %587 = vmatprep.subr.mxu0 0.0
          %588 = vmatpush1.msra.mxu0 0.0
          %589 = vmatprep.subr.mxu0 0.0
          %590 = vmatpush1.msra.mxu0 0.0
          %591 = vmatprep.subr.mxu0 0.0
          %592 = vmatpush1.msra.mxu0 0.0
          %593 = vmatprep.subr.mxu0 0.0
          %594 = vmatpush1.msra.mxu0 0.0
          %595 = vmatprep.subr.mxu0 0.0
          %596 = vmatpush1.msra.mxu0 0.0
          %597 = vmatprep.mubr.f32.mxu0 0.0
          %598 = vmatmul.mubr.f32.gmra.mrb[0].mxu0 %v531
          %v599 = vpop.f32.mrb[0].mxu0
          %v600 = vadd.f32 %v527, %v599
          %v601 = vpop.f32.mrb[0].mxu0
          %602 = vdwg.mxu0
          %v603 = vmul.f32 %v600, 0.5
          %v604 = vmul.f32 %v600, 0.70710677
          %v605 = verf.f32.pop %v604
          %v606 = vadd.f32 %v605, 1.0
          %v607 = vmul.f32 %v603, %v606
          %v608 = vld [vmem:[%s5] sm:$0xff]
          %v609 = vld [vmem:[%s6] sm:$0x1]
          %v611 = vlaneseq
          %v612 = vshrl.u32 %v611, 7
          %v613 = vsub.s32 0, %v612
          %v614 = vrot.slane %v609, %v613
          %vm616 = vcmask 64512
          %v618 = vsel %vm616, %v607, 0
          %620 = vmatprep.subr.mxu0 0.0
          %621 = vmatpush1.msra.mxu0 %v608
          %622 = vmatprep.subr.mxu0 0.0
          %623 = vmatpush1.msra.mxu0 0.0
          %624 = vmatprep.subr.mxu0 0.0
          %625 = vmatpush1.msra.mxu0 0.0
          %626 = vmatprep.subr.mxu0 0.0
          %627 = vmatpush1.msra.mxu0 0.0
          %628 = vmatprep.subr.mxu0 0.0
          %629 = vmatpush1.msra.mxu0 0.0
          %630 = vmatprep.subr.mxu0 0.0
          %631 = vmatpush1.msra.mxu0 0.0
          %632 = vmatprep.subr.mxu0 0.0
          %633 = vmatpush1.msra.mxu0 0.0
          %634 = vmatprep.subr.mxu0 0.0
          %635 = vmatpush1.msra.mxu0 0.0
          %636 = vmatprep.subr.mxu0 0.0
          %637 = vmatpush1.msra.mxu0 0.0
          %638 = vmatprep.subr.mxu0 0.0
          %639 = vmatpush1.msra.mxu0 0.0
          %640 = vmatprep.subr.mxu0 0.0
          %641 = vmatpush1.msra.mxu0 0.0
          %642 = vmatprep.subr.mxu0 0.0
          %643 = vmatpush1.msra.mxu0 0.0
          %644 = vmatprep.subr.mxu0 0.0
          %645 = vmatpush1.msra.mxu0 0.0
          %646 = vmatprep.subr.mxu0 0.0
          %647 = vmatpush1.msra.mxu0 0.0
          %648 = vmatprep.subr.mxu0 0.0
          %649 = vmatpush1.msra.mxu0 0.0
          %650 = vmatprep.subr.mxu0 0.0
          %651 = vmatpush1.msra.mxu0 0.0
          %652 = vmatprep.subr.mxu0 0.0
          %653 = vmatpush1.msra.mxu0 0.0
          %654 = vmatprep.subr.mxu0 0.0
          %655 = vmatpush1.msra.mxu0 0.0
          %656 = vmatprep.subr.mxu0 0.0
          %657 = vmatpush1.msra.mxu0 0.0
          %658 = vmatprep.subr.mxu0 0.0
          %659 = vmatpush1.msra.mxu0 0.0
          %660 = vmatprep.subr.mxu0 0.0
          %661 = vmatpush1.msra.mxu0 0.0
          %662 = vmatprep.subr.mxu0 0.0
          %663 = vmatpush1.msra.mxu0 0.0
          %664 = vmatprep.subr.mxu0 0.0
          %665 = vmatpush1.msra.mxu0 0.0
          %666 = vmatprep.subr.mxu0 0.0
          %667 = vmatpush1.msra.mxu0 0.0
          %668 = vmatprep.subr.mxu0 0.0
          %669 = vmatpush1.msra.mxu0 0.0
          %670 = vmatprep.subr.mxu0 0.0
          %671 = vmatpush1.msra.mxu0 0.0
          %672 = vmatprep.subr.mxu0 0.0
          %673 = vmatpush1.msra.mxu0 0.0
          %674 = vmatprep.subr.mxu0 0.0
          %675 = vmatpush1.msra.mxu0 0.0
          %676 = vmatprep.subr.mxu0 0.0
          %677 = vmatpush1.msra.mxu0 0.0
          %678 = vmatprep.subr.mxu0 0.0
          %679 = vmatpush1.msra.mxu0 0.0
          %680 = vmatprep.subr.mxu0 0.0
          %681 = vmatpush1.msra.mxu0 0.0
          %682 = vmatprep.subr.mxu0 0.0
          %683 = vmatpush1.msra.mxu0 0.0
          %684 = vmatprep.mubr.f32.mxu0 0.0
          %685 = vmatmul.mubr.f32.gmra.mrb[0].mxu0 %v618
          %v686 = vpop.f32.mrb[0].mxu0
          %v687 = vadd.f32 %v614, %v686
          %v688 = vpop.f32.mrb[0].mxu0
          %689 = vdwg.mxu0
          %vm690 = vcmask 74752
          %v691 = vsel %vm690, %v687, -inf
          %692 = vmax.xlane.f32.xlu0 %v691
          %v693 = vpop.xlane.xlu0 %692
          %v694 = vsub.f32 %v687, %v693
          %v695 = vmul.f32 %v694, 1.442695
          %v696 = vpow.pop %v695
          %v697 = vsel %vm690, %v696, 0.0
          %698 = vadd.xlane.f32.xlu0 %v697
          %v699 = vpop.xlane.xlu0 %698
          %v700 = vrcp.pop %v699
          %v701 = vmul.f32 %v696, %v700
          %v702 = vld [vmem:[%s7] sm:$0xff]
          %v703 = vld [vmem:[#allocation3] sm:$0x1]
          %v705 = vlaneseq
          %v706 = vshrl.u32 %v705, 7
          %v707 = vsub.s32 0, %v706
          %v708 = vrot.slane %v703, %v707
          %v711 = vsel %vm616, %v519, 0
          %713 = vmatprep.subr.mxu0 0.0
          %714 = vmatpush1.msra.mxu0 %v702
          %715 = vmatprep.subr.mxu0 0.0
          %716 = vmatpush1.msra.mxu0 0.0
          %717 = vmatprep.subr.mxu0 0.0
          %718 = vmatpush1.msra.mxu0 0.0
          %719 = vmatprep.subr.mxu0 0.0
          %720 = vmatpush1.msra.mxu0 0.0
          %721 = vmatprep.subr.mxu0 0.0
          %722 = vmatpush1.msra.mxu0 0.0
          %723 = vmatprep.subr.mxu0 0.0
          %724 = vmatpush1.msra.mxu0 0.0
          %725 = vmatprep.subr.mxu0 0.0
          %726 = vmatpush1.msra.mxu0 0.0
          %727 = vmatprep.subr.mxu0 0.0
          %728 = vmatpush1.msra.mxu0 0.0
          %729 = vmatprep.subr.mxu0 0.0
          %730 = vmatpush1.msra.mxu0 0.0
          %731 = vmatprep.subr.mxu0 0.0
          %732 = vmatpush1.msra.mxu0 0.0
          %733 = vmatprep.subr.mxu0 0.0
          %734 = vmatpush1.msra.mxu0 0.0
          %735 = vmatprep.subr.mxu0 0.0
          %736 = vmatpush1.msra.mxu0 0.0
          %737 = vmatprep.subr.mxu0 0.0
          %738 = vmatpush1.msra.mxu0 0.0
          %739 = vmatprep.subr.mxu0 0.0
          %740 = vmatpush1.msra.mxu0 0.0
          %741 = vmatprep.subr.mxu0 0.0
          %742 = vmatpush1.msra.mxu0 0.0
          %743 = vmatprep.subr.mxu0 0.0
          %744 = vmatpush1.msra.mxu0 0.0
          %745 = vmatprep.subr.mxu0 0.0
          %746 = vmatpush1.msra.mxu0 0.0
          %747 = vmatprep.subr.mxu0 0.0
          %748 = vmatpush1.msra.mxu0 0.0
          %749 = vmatprep.subr.mxu0 0.0
          %750 = vmatpush1.msra.mxu0 0.0
          %751 = vmatprep.subr.mxu0 0.0
          %752 = vmatpush1.msra.mxu0 0.0
          %753 = vmatprep.subr.mxu0 0.0
          %754 = vmatpush1.msra.mxu0 0.0
          %755 = vmatprep.subr.mxu0 0.0
          %756 = vmatpush1.msra.mxu0 0.0
          %757 = vmatprep.subr.mxu0 0.0
          %758 = vmatpush1.msra.mxu0 0.0
          %759 = vmatprep.subr.mxu0 0.0
          %760 = vmatpush1.msra.mxu0 0.0
          %761 = vmatprep.subr.mxu0 0.0
          %762 = vmatpush1.msra.mxu0 0.0
          %763 = vmatprep.subr.mxu0 0.0
          %764 = vmatpush1.msra.mxu0 0.0
          %765 = vmatprep.subr.mxu0 0.0
          %766 = vmatpush1.msra.mxu0 0.0
          %767 = vmatprep.subr.mxu0 0.0
          %768 = vmatpush1.msra.mxu0 0.0
          %769 = vmatprep.subr.mxu0 0.0
          %770 = vmatpush1.msra.mxu0 0.0
          %771 = vmatprep.subr.mxu0 0.0
          %772 = vmatpush1.msra.mxu0 0.0
          %773 = vmatprep.subr.mxu0 0.0
          %774 = vmatpush1.msra.mxu0 0.0
          %775 = vmatprep.subr.mxu0 0.0
          %776 = vmatpush1.msra.mxu0 0.0
          %777 = vmatprep.mubr.f32.mxu0 0.0
          %778 = vmatmul.mubr.f32.gmra.mrb[0].mxu0 %v711
          %v779 = vpop.f32.mrb[0].mxu0
          %v780 = vadd.f32 %v708, %v779
          %v781 = vpop.f32.mrb[0].mxu0
          %782 = vdwg.mxu0
          %v783 = vxor.u32 %v780, 2147483648
          %v784 = vmul.f32 %v783, 1.442695
          %v785 = vpow.pop %v784
          %v786 = vadd.f32 %v785, 1.0
          %v787 = vrcp.pop %v786
          %v788 = vmul.f32 1.0, %v787
          %790 = vrot.lane.b32.xlu0 %v788, 10
          %v791 = vpop.permute.xlu0 %790
          %vm793 = vcmask 80896
          %v794 = vsel %vm793, %v701, %v791
          %vm795 = vcmask 89088
          %v796 = vsel %vm795, %v794, 0.0
          %797 = vst [vmem:[#allocation9] sm:$0x3] %v796
        $region72: #{tpu_custom_call.1} parent=55 // pred_fallthru
          _
        // Predicated region
        $region73: #{tpu_custom_call.1} parent=55 // pred_check
          %p798 = pneg %p253
        $region74: #{tpu_custom_call.1} parent=55 // pred_check_branch
          %800 = sbr.rel (%p798) target = $region76
        $region75: #{tpu_custom_call.1} parent=55 // pred_region
          %s802 = ssub.s32 32, 32
          %803 = vsyncadd [#allocation6], %s802
          %s804 = smul.addr %s31, 32
          %s805 = scalar_lea.hbm %s9, %s804
          %s807 = sshll.u32 [#allocation9], 4
          %s808 = int_to_ptr.vmem [resolvable:$true] %s807
          %810 = dma.vmem_to_hbm [thread:$0]  %s808, 32, %s805, [#allocation6]
        $region76: #{tpu_custom_call.1} parent=55 // pred_fallthru
          _
        // Predicated region
        $region77: #{tpu_custom_call.1} parent=55 // pred_check
          %p811 = pneg %p253
        $region78: #{tpu_custom_call.1} parent=55 // pred_check_branch
          %813 = sbr.rel (%p811) target = $region80
        $region79: #{tpu_custom_call.1} parent=55 // pred_region
          %814 = dma.done [#allocation6], 32
        $region80: #{tpu_custom_call.1} parent=55 // pred_fallthru
          _
      $region56: #{tpu_custom_call.1} parent=5 // pred_fallthru
        _
      %p815 = scmp.le.s32.totalorder 2, %s22
      // Predicated region
      $region81: #{tpu_custom_call.1} parent=5 // pred_check
        %p816 = pneg %p815
      $region82: #{tpu_custom_call.1} parent=5 // pred_check_branch
        %818 = sbr.rel (%p816) target = $region84
      $region83: #{tpu_custom_call.1} parent=5 // pred_region
        %s819 = ssub.s32 %s22, 2
      $region84: #{tpu_custom_call.1} parent=5 // pred_fallthru
        _
    $region6: #{tpu_custom_call.1} parent=1 // loop_footer
      %s26 = sadd.s32 1, %s22
    $region7: #{tpu_custom_call.1} parent=1 // loop_footer_branch
      %21 = sbr.rel target = $region3
    $region8: #{tpu_custom_call.1} parent=1 // loop_exit
      _
    %820 = vsyncpa [#allocation5], 1
    %s821 = scalar_lea.sflag [#allocation5], 1
    %822 = vsyncpa %s821, 1
    %823 = vsyncpa [#allocation8], 1
    %824 = vsyncpa [#allocation6], 1
    %s825 = scalar_lea.sflag [#allocation6], 1
    %826 = vsyncpa %s825, 1

</llo_original>
